<compile_context>
chip_gen: v7x
topology: tpu7x:2x2x1
jax: 0.10.0
libtpu: 0.0.40
codegen_flags: <defaults>
</compile_context>

<pallas_src>
import functools
import math

import jax
import jax.numpy as jnp
from jax.experimental import pallas as pl
from jax.experimental.pallas import tpu as pltpu


def _round_up(x, m):
    return (x + m - 1) // m * m


def _sublane_multiple(dtype):
    # 8 rows per vreg sublane group for 4-byte types, 16 for bf16, 32 for int8.
    return 8 * max(4 // max(dtype.itemsize, 1), 1)


def _vmem_capacity_bytes():
    try:
        cap = int(pltpu.get_tpu_info().vmem_capacity_bytes)
        if cap > 0:
            return cap
    except Exception:
        pass
    return 64 << 20   # conservative fallback (v7x per-TC size)


def _lora_kernel(alpha_ref, x_ref, a_ref, b_ref, *refs, fuse_base):
    o_ref = refs[-1]
    # (TM, in_dim) @ (in_dim, rank_p) on the MXU, f32 accumulation.
    xa = jnp.dot(x_ref[...], a_ref[...], preferred_element_type=jnp.float32)
    # Scale the small (TM, rank_p) intermediate instead of the wide output.
    xa = alpha_ref[0, 0] * xa
    # (TM, rank_p) @ (rank_p, out_p), f32 accumulation.
    out = jnp.dot(xa.astype(b_ref.dtype), b_ref[...],
                  preferred_element_type=jnp.float32)
    if fuse_base:
        out = out + refs[0][...].astype(jnp.float32)
    o_ref[...] = out.astype(o_ref.dtype)


def lora_forward(x, A, B, alpha, *, base=None, tm=None):
    """out = alpha * x @ A @ B  (+ base, fused, if base is given).

    x: (..., in_dim). A: (in_dim, rank). B: (rank, out_dim).
    base: optional (..., out_dim) tensor the LoRA update is added to.
    """
    orig_shape = x.shape
    in_dim = orig_shape[-1]
    rank = A.shape[1]
    out_dim = B.shape[1]

    x2d = x.reshape(-1, in_dim)
    M = x2d.shape[0]
    sub = _sublane_multiple(x2d.dtype)

    # --- inert zero-padding of the tiny LoRA weights only (never x / base). ---
    rank_p = _round_up(max(rank, 1), sub)
    if rank >= 64:
        rank_p = _round_up(rank, 128)        # lane-dense A / full MXU columns
    out_p = _round_up(out_dim, 128)          # lane-dense unmasked output stores
    if rank_p != rank:
        A = jnp.pad(A, ((0, 0), (0, rank_p - rank)))
        B = jnp.pad(B, ((0, rank_p - rank), (0, 0)))
    if out_p != out_dim:
        B = jnp.pad(B, ((0, 0), (0, out_p - out_dim)))

    y2d = None if base is None else base.reshape(-1, out_dim)
    fuse_base = y2d is not None

    # --- generation-aware tile size: largest TM fitting ~0.75 of VMEM. ---
    cap = _vmem_capacity_bytes()
    budget = int(0.75 * cap)
    xbytes = x2d.dtype.itemsize
    wbytes = A.dtype.itemsize
    weight_vmem = 2 * (in_dim * rank_p + rank_p * out_p) * wbytes
    per_row = 2 * (in_dim + out_p) * xbytes          # double-buffered x/out streams
    if fuse_base:
        per_row += 2 * out_p * y2d.dtype.itemsize    # double-buffered base stream
    per_row += (out_p + rank_p) * 4                  # in-kernel f32 temporaries
    headroom = 2 << 20
    tm_cap = max(sub, ((budget - weight_vmem - headroom) // per_row) // sub * sub)
    if tm is not None:
        tm_cap = min(tm_cap, _round_up(max(tm, 1), sub))
    # Keep >= 2 grid steps when M allows so the "parallel" axis can split
    # across both TensorCores on v7x.
    TM = min(tm_cap, max(sub, _round_up(pl.cdiv(M, 2), sub)))
    grid = (pl.cdiv(M, TM),)

    vmem_bytes = TM * per_row + weight_vmem + headroom
    vmem_bytes = int(max(min(vmem_bytes, int(0.92 * cap)), 4 << 20))

    alpha_arr = jnp.full((1, 1), alpha, dtype=jnp.float32)

    in_specs = [
        pl.BlockSpec(memory_space=pltpu.MemorySpace.SMEM),   # alpha scalar
        pl.BlockSpec((TM, in_dim), lambda i: (i, 0)),        # x row-stream
        pl.BlockSpec((in_dim, rank_p), lambda i: (0, 0)),    # A (VMEM-resident)
        pl.BlockSpec((rank_p, out_p), lambda i: (0, 0)),     # B (VMEM-resident)
    ]
    args = [alpha_arr, x2d, A, B]
    io_aliases = {}
    if fuse_base:
        in_specs.append(pl.BlockSpec((TM, out_p), lambda i: (i, 0)))
        args.append(y2d)
        # Alias base -> output when layouts match exactly: removes the extra
        # output-sized HBM read+write of a separate "base + lora" add.
        if out_p == out_dim and y2d.dtype == x2d.dtype:
            io_aliases = {4: 0}

    out2d = pl.pallas_call(
        functools.partial(_lora_kernel, fuse_base=fuse_base),
        out_shape=jax.ShapeDtypeStruct((M, out_p), x2d.dtype),
        grid=grid,
        in_specs=in_specs,
        out_specs=pl.BlockSpec((TM, out_p), lambda i: (i, 0)),
        input_output_aliases=io_aliases,
        compiler_params=pltpu.CompilerParams(
            dimension_semantics=("parallel",),
            vmem_limit_bytes=vmem_bytes,
        ),
    )(*args)

    if out_p != out_dim:
        out2d = out2d[:, :out_dim]
    return out2d.reshape(*orig_shape[:-1], out_dim)


def init_lora_params(key, in_dim, rank, out_dim, dtype=jnp.float32):
    # Mirror torch.nn.init.kaiming_uniform_(A, a=sqrt(5)) on (in_dim, rank):
    # fan_in = rank -> bound = 1/sqrt(rank).  B starts at zeros as in the module.
    bound = 1.0 / math.sqrt(rank)
    A = jax.random.uniform(key, (in_dim, rank), dtype=dtype,
                           minval=-bound, maxval=bound)
    B = jnp.zeros((rank, out_dim), dtype=dtype)
    return A, B


if __name__ == "__main__":
    key = jax.random.PRNGKey(0)
    kx, ka, kb, kx2, ka2, kb2, kx3, ka3, kb3, ky3 = jax.random.split(key, 10)
    alpha = 2.0

    # --- test 1: module-sized small shapes (f32, padded rank/out, grid=2). ---
    batch, seq, in_dim, out_dim, rank = 2, 8, 32, 32, 4
    x = jax.random.normal(kx, (batch, seq, in_dim), dtype=jnp.float32)
    A, B0 = init_lora_params(ka, in_dim, rank, out_dim)
    B = jax.random.normal(kb, (rank, out_dim), dtype=jnp.float32) * 0.1

    out = jax.block_until_ready(lora_forward(x, A, B, alpha))
    ref = alpha * (x @ A @ B)
    assert out.shape == (batch, seq, out_dim)
    assert jnp.allclose(out, ref, atol=1e-2, rtol=1e-2), "mismatch (test 1)"

    # Zero-init B (the module's initial state) must give exactly zeros.
    out0 = jax.block_until_ready(lora_forward(x, A, B0, alpha))
    assert jnp.allclose(out0, jnp.zeros_like(out0)), "zero-B path mismatch"

    # --- test 2: ragged M (no padding of x), auto TM and explicit-TM grids. ---
    batch2, seq2, in2, out2, rank2 = 2, 100, 128, 256, 4      # M = 200
    x2 = jax.random.normal(kx2, (batch2, seq2, in2), dtype=jnp.float32)
    A2 = jax.random.normal(ka2, (in2, rank2), dtype=jnp.float32) / math.sqrt(in2)
    B2 = jax.random.normal(kb2, (rank2, out2), dtype=jnp.float32) * 0.1
    r2 = alpha * (x2 @ A2 @ B2)

    o2a = jax.block_until_ready(lora_forward(x2, A2, B2, alpha))          # auto TM
    o2b = jax.block_until_ready(lora_forward(x2, A2, B2, alpha, tm=64))   # multi-tile
    assert o2a.shape == (batch2, seq2, out2)
    assert jnp.allclose(o2a, r2, atol=1e-2, rtol=1e-2), "mismatch (test 2 auto)"
    assert jnp.allclose(o2b, r2, atol=1e-2, rtol=1e-2), "mismatch (test 2 tiled)"

    # --- test 3: bf16 streaming + fused base add with input/output aliasing. ---
    batch3, seq3, in3, out3, rank3 = 2, 32, 128, 256, 8       # M = 64
    x3 = jax.random.normal(kx3, (batch3, seq3, in3), dtype=jnp.bfloat16)
    A3 = (jax.random.normal(ka3, (in3, rank3), dtype=jnp.float32)
          / math.sqrt(in3)).astype(jnp.bfloat16)
    B3 = (jax.random.normal(kb3, (rank3, out3), dtype=jnp.float32)
          * 0.1).astype(jnp.bfloat16)
    y3 = jax.random.normal(ky3, (batch3, seq3, out3), dtype=jnp.bfloat16)

    o3 = jax.block_until_ready(lora_forward(x3, A3, B3, alpha, base=y3))
    r3 = (y3.astype(jnp.float32)
          + alpha * (x3.astype(jnp.float32) @ A3.astype(jnp.float32)
                     @ B3.astype(jnp.float32)))
    assert o3.shape == (batch3, seq3, out3)
    assert jnp.allclose(o3.astype(jnp.float32), r3, atol=5e-2, rtol=5e-2), \
        "mismatch (test 3 fused bf16)"

    print("KERNEL_OK")
</pallas_src>

<mosaic_0001>
module attributes {stable_mosaic.version = 11 : i64} {
  func.func @_lora_kernel(%arg0: i32, %arg1: memref<1x1xf32, #tpu.memory_space<smem>>, %arg2: memref<8x32xf32, #tpu.memory_space<vmem>>, %arg3: memref<32x8xf32, #tpu.memory_space<vmem>>, %arg4: memref<8x128xf32, #tpu.memory_space<vmem>>, %arg5: memref<8x128xf32, #tpu.memory_space<vmem>>) attributes {dimension_semantics = [#tpu.dimension_semantics<parallel>], iteration_bounds = array<i64: 2>, scalar_prefetch = 0 : i64, scratch_operands = 0 : i64, tpu.core_type = #tpu.core_type<tc>, window_params = [{transform_indices = @transform_0, window_bounds = array<i64: 1, 1>}, {transform_indices = @transform_1, window_bounds = array<i64: 8, 32>}, {pipeline_mode = #tpu.pipeline_mode<synchronous>, transform_indices = @transform_2, window_bounds = array<i64: 32, 8>}, {pipeline_mode = #tpu.pipeline_mode<synchronous>, transform_indices = @transform_3, window_bounds = array<i64: 8, 128>}, {transform_indices = @transform_4, window_bounds = array<i64: 8, 128>}]} {
    %c0 = arith.constant 0 : index
    %c0_0 = arith.constant 0 : index
    %0 = vector.load %arg2[%c0, %c0_0] : memref<8x32xf32, #tpu.memory_space<vmem>>, vector<8x32xf32>
    %c0_1 = arith.constant 0 : index
    %c0_2 = arith.constant 0 : index
    %1 = vector.load %arg3[%c0_1, %c0_2] : memref<32x8xf32, #tpu.memory_space<vmem>>, vector<32x8xf32>
    %cst = arith.constant dense<0.000000e+00> : vector<8x8xf32>
    %2 = tpu.matmul %0, %1, %cst {dimension_numbers = #tpu.dot_dimension_numbers<[1], [0], [0], [1], [0, 0, 1, 1], [], []>} : vector<8x32xf32>, vector<32x8xf32>, vector<8x8xf32> -> vector<8x8xf32>
    %c0_3 = arith.constant 0 : index
    %c0_4 = arith.constant 0 : index
    %3 = memref.load %arg1[%c0_3, %c0_4] : memref<1x1xf32, #tpu.memory_space<smem>>
    %4 = vector.broadcast %3 : f32 to vector<8x8xf32>
    %5 = arith.mulf %4, %2 : vector<8x8xf32>
    %c0_5 = arith.constant 0 : index
    %c0_6 = arith.constant 0 : index
    %6 = vector.load %arg4[%c0_5, %c0_6] : memref<8x128xf32, #tpu.memory_space<vmem>>, vector<8x128xf32>
    %cst_7 = arith.constant dense<0.000000e+00> : vector<8x128xf32>
    %7 = tpu.matmul %5, %6, %cst_7 {dimension_numbers = #tpu.dot_dimension_numbers<[1], [0], [0], [1], [0, 0, 1, 1], [], []>} : vector<8x8xf32>, vector<8x128xf32>, vector<8x128xf32> -> vector<8x128xf32>
    %c0_8 = arith.constant 0 : index
    %c0_9 = arith.constant 0 : index
    %8 = vector.load %arg5[%c0_8, %c0_9] : memref<8x128xf32, #tpu.memory_space<vmem>>, vector<8x128xf32>
    tpu.vector_store %arg5[%c0_8, %c0_9], %7 {strides = array<i32>} : memref<8x128xf32, #tpu.memory_space<vmem>>, vector<8x128xf32>,
    return
  }
  func.func @transform_0(%arg0: i32) -> (i32, i32) {
    %c0_i32 = arith.constant 0 : i32
    %c0_i32_0 = arith.constant 0 : i32
    %c0_i32_1 = arith.constant 0 : i32
    return %c0_i32, %c0_i32_0 : i32, i32
  }
  func.func @transform_1(%arg0: i32) -> (i32, i32) {
    %c0_i32 = arith.constant 0 : i32
    %c0_i32_0 = arith.constant 0 : i32
    return %arg0, %c0_i32 : i32, i32
  }
  func.func @transform_2(%arg0: i32) -> (i32, i32) {
    %c0_i32 = arith.constant 0 : i32
    %c0_i32_0 = arith.constant 0 : i32
    %c0_i32_1 = arith.constant 0 : i32
    return %c0_i32, %c0_i32_0 : i32, i32
  }
  func.func @transform_3(%arg0: i32) -> (i32, i32) {
    %c0_i32 = arith.constant 0 : i32
    %c0_i32_0 = arith.constant 0 : i32
    %c0_i32_1 = arith.constant 0 : i32
    return %c0_i32, %c0_i32_0 : i32, i32
  }
  func.func @transform_4(%arg0: i32) -> (i32, i32) {
    %c0_i32 = arith.constant 0 : i32
    %c0_i32_0 = arith.constant 0 : i32
    return %arg0, %c0_i32 : i32, i32
  }
}

</mosaic_0001>

<llo_original>
// kernel: tpu_custom_call.1
$region0: #{tpu_custom_call.1}
  #allocation0 [shape = 'u32[]', space=smem, size = 0x4, offset = 0x4, fixed_abs, tag = 'smem constant byte address 0x4 - core index']
  #allocation1 [shape = 'u32[144,128]{1,0:T(1,128)}', space=vmem, size = 0x12000, scoped, tag = 'internal scratch']
  #allocation2 [shape = 'f32[1,1]{1,0:T(1,128)S(6)}', space=smem, size = 0x200, scoped, tag = 'scoped memory for tpu_custom_call.1']
  %s0 = inlined_call_operand.<no memory space> [shape: f32[1,1], index: 0, kind: input, shape index: {}]
  %s1 = inlined_call_operand.vmem [shape: f32[16,32], index: 1, kind: input, shape index: {}]
  %s2 = inlined_call_operand.vmem [shape: f32[32,8], index: 2, kind: input, shape index: {}]
  %s3 = inlined_call_operand.vmem [shape: f32[8,128], index: 3, kind: input, shape index: {}]
  %s4 = inlined_call_operand.hbm [shape: f32[16,128], index: 4, kind: output, shape index: {}]
  %s5 = sld [smem:[#allocation0]]
  $region49: #{tpu_custom_call.1} parent=0
    _
  %s7 = ssub.s32 1, %s5
  %s8 = scalar_select 0, %s7, %s5
  %9 = sst [smem:[#allocation2]] %s0
  $region1: #{tpu_custom_call.1} parent=0
    #allocation3 [shape = 'u8[8192]{0}', space=vmem, size = 0x2000, scoped, tag = 'output window, operand 0']
    #allocation4 [shape = 's32[2]{0}', space=sflag, size = 0x8, scoped, tag = 'scoped memory for tpu_custom_call.1']
    %10 = vsyncpa [#allocation4], 0
    %s11 = scalar_lea.sflag [#allocation4], 1
    %12 = vsyncpa %s11, 0
    loop: start=0, step=1, limit=4
    $region2: #{tpu_custom_call.1} parent=1 // loop_pre_header
      _
    $region3: #{tpu_custom_call.1} parent=1 // loop_header
      %s14 = sphi 0, %s18
      %p15 = scmp.ge.s32.totalorder %s14, 4
      %s22 = sphi 0, %s22
      %s24 = sphi 0, %s22
      %s25 = sphi 0, %s24
      %s39 = sphi 0, %s25
      %s45 = sphi 0, %s47
      %s48 = sphi 0, %s45
      %s49 = sphi 0, %s48
      %s65 = sphi 0, %s49
      %s69 = sphi 0, %s69
      %s71 = sphi 0, %s69
      %s72 = sphi 0, %s71
      %s86 = sphi 0, %s72
      %s90 = sphi 0, %s90
      %s92 = sphi 0, %s90
      %s93 = sphi 0, %s92
      %s107 = sphi 0, %s93
      %s113 = sphi 0, %s115
      %s116 = sphi 0, %s113
      %s117 = sphi 0, %s116
      %s133 = sphi 0, %s117
    $region4: #{tpu_custom_call.1} parent=1 // loop_header_branch
      %17 = sbr.rel (%p15) target = $region8
    $region5: #{tpu_custom_call.1} parent=1 // loop_body
      %s19 = ssub.s32 %s14, 1
      %s20 = ssub.s32 %s14, 2
      %s21 = sadd.s32 %s14, 1
      %s23 = sadd.s32 %s22, 1
      %p26 = scmp.eq.s32.totalorder %s14, 1
      %p27 = scmp.ne.s32.totalorder %s22, %s24
      %p28 = scmp.eq.s32.totalorder %s14, 0
      %p29 = por %p27, %p28
      %p30 = scmp.ne.s32.totalorder %s22, %s24
      %p31 = scmp.eq.s32.totalorder %s19, 1
      %p32 = por %p30, %p31
      %p33 = scmp.ne.s32.totalorder %s24, %s25
      %p34 = scmp.eq.s32.totalorder %s19, 0
      %p35 = por %p33, %p34
      %p36 = scmp.ne.s32.totalorder %s24, %s25
      %p37 = scmp.eq.s32.totalorder %s20, 1
      %p38 = por %p36, %p37
      %p40 = scmp.ne.s32.totalorder %s25, %s39
      %p41 = scmp.eq.s32.totalorder %s20, 0
      %p42 = por %p40, %p41
      %s43 = ssub.s32 %s14, %s21
      %p44 = scmp.eq.s32.totalorder %s43, 0
      %s46 = sadd.s32 %s45, 1
      %s47 = scalar_select %p44, %s45, %s46
      %p50 = pneg %p44
      %p51 = scmp.eq.s32.totalorder %s14, 1
      %p52 = por %p50, %p51
      %p53 = scmp.ne.s32.totalorder %s45, %s48
      %p54 = scmp.eq.s32.totalorder %s14, 0
      %p55 = por %p53, %p54
      %p56 = scmp.ne.s32.totalorder %s45, %s48
      %p57 = scmp.eq.s32.totalorder %s19, 1
      %p58 = por %p56, %p57
      %p59 = scmp.ne.s32.totalorder %s48, %s49
      %p60 = scmp.eq.s32.totalorder %s19, 0
      %p61 = por %p59, %p60
      %p62 = scmp.ne.s32.totalorder %s48, %s49
      %p63 = scmp.eq.s32.totalorder %s20, 1
      %p64 = por %p62, %p63
      %p66 = scmp.ne.s32.totalorder %s49, %s65
      %p67 = scmp.eq.s32.totalorder %s20, 0
      %p68 = por %p66, %p67
      %s70 = sadd.s32 %s69, 1
      %p73 = scmp.eq.s32.totalorder %s14, 1
      %p74 = scmp.ne.s32.totalorder %s69, %s71
      %p75 = scmp.eq.s32.totalorder %s14, 0
      %p76 = por %p74, %p75
      %p77 = scmp.ne.s32.totalorder %s69, %s71
      %p78 = scmp.eq.s32.totalorder %s19, 1
      %p79 = por %p77, %p78
      %p80 = scmp.ne.s32.totalorder %s71, %s72
      %p81 = scmp.eq.s32.totalorder %s19, 0
      %p82 = por %p80, %p81
      %p83 = scmp.ne.s32.totalorder %s71, %s72
      %p84 = scmp.eq.s32.totalorder %s20, 1
      %p85 = por %p83, %p84
      %p87 = scmp.ne.s32.totalorder %s72, %s86
      %p88 = scmp.eq.s32.totalorder %s20, 0
      %p89 = por %p87, %p88
      %s91 = sadd.s32 %s90, 1
      %p94 = scmp.eq.s32.totalorder %s14, 1
      %p95 = scmp.ne.s32.totalorder %s90, %s92
      %p96 = scmp.eq.s32.totalorder %s14, 0
      %p97 = por %p95, %p96
      %p98 = scmp.ne.s32.totalorder %s90, %s92
      %p99 = scmp.eq.s32.totalorder %s19, 1
      %p100 = por %p98, %p99
      %p101 = scmp.ne.s32.totalorder %s92, %s93
      %p102 = scmp.eq.s32.totalorder %s19, 0
      %p103 = por %p101, %p102
      %p104 = scmp.ne.s32.totalorder %s92, %s93
      %p105 = scmp.eq.s32.totalorder %s20, 1
      %p106 = por %p104, %p105
      %p108 = scmp.ne.s32.totalorder %s93, %s107
      %p109 = scmp.eq.s32.totalorder %s20, 0
      %p110 = por %p108, %p109
      %s111 = ssub.s32 %s14, %s21
      %p112 = scmp.eq.s32.totalorder %s111, 0
      %s114 = sadd.s32 %s113, 1
      %s115 = scalar_select %p112, %s113, %s114
      %p118 = pneg %p112
      %p119 = scmp.eq.s32.totalorder %s14, 1
      %p120 = por %p118, %p119
      %p121 = scmp.ne.s32.totalorder %s113, %s116
      %p122 = scmp.eq.s32.totalorder %s14, 0
      %p123 = por %p121, %p122
      %p124 = scmp.ne.s32.totalorder %s113, %s116
      %p125 = scmp.eq.s32.totalorder %s19, 1
      %p126 = por %p124, %p125
      %p127 = scmp.ne.s32.totalorder %s116, %s117
      %p128 = scmp.eq.s32.totalorder %s19, 0
      %p129 = por %p127, %p128
      %p130 = scmp.ne.s32.totalorder %s116, %s117
      %p131 = scmp.eq.s32.totalorder %s20, 1
      %p132 = por %p130, %p131
      %p134 = scmp.ne.s32.totalorder %s117, %s133
      %p135 = scmp.eq.s32.totalorder %s20, 0
      %p136 = por %p134, %p135
      %p137 = scmp.le.s32.totalorder 1, %s14
      %p138 = scmp.lt.s32.totalorder %s14, 3
      %p139 = pnand %p137, %p138
      %p140 = pneg %p139
      // Predicated region
      $region9: #{tpu_custom_call.1} parent=5 // pred_check
        _
      $region10: #{tpu_custom_call.1} parent=5 // pred_check_branch
        %142 = sbr.rel (%p139) target = $region12
      $region11: #{tpu_custom_call.1} parent=5 // pred_region
        %s143 = ssub.s32 %s14, 1
        // Predicated region
        $region13: #{tpu_custom_call.1} parent=11 // pred_check
          %p144 = pneg %p35
        $region14: #{tpu_custom_call.1} parent=11 // pred_check_branch
          %146 = sbr.rel (%p144) target = $region16
        $region15: #{tpu_custom_call.1} parent=11 // pred_region
          _
        $region16: #{tpu_custom_call.1} parent=11 // pred_fallthru
          _
        // Predicated region
        $region17: #{tpu_custom_call.1} parent=11 // pred_check
          %p147 = pneg %p82
        $region18: #{tpu_custom_call.1} parent=11 // pred_check_branch
          %149 = sbr.rel (%p147) target = $region20
        $region19: #{tpu_custom_call.1} parent=11 // pred_region
          _
        $region20: #{tpu_custom_call.1} parent=11 // pred_fallthru
          _
        // Predicated region
        $region21: #{tpu_custom_call.1} parent=11 // pred_check
          %p150 = pneg %p103
        $region22: #{tpu_custom_call.1} parent=11 // pred_check_branch
          %152 = sbr.rel (%p150) target = $region24
        $region23: #{tpu_custom_call.1} parent=11 // pred_region
          _
        $region24: #{tpu_custom_call.1} parent=11 // pred_fallthru
          _
      $region12: #{tpu_custom_call.1} parent=5 // pred_fallthru
        _
      %p153 = scmp.lt.s32.totalorder %s14, 2
      // Predicated region
      $region25: #{tpu_custom_call.1} parent=5 // pred_check
        %p154 = pneg %p153
      $region26: #{tpu_custom_call.1} parent=5 // pred_check_branch
        %156 = sbr.rel (%p154) target = $region28
      $region27: #{tpu_custom_call.1} parent=5 // pred_region
        // Predicated region
        $region29: #{tpu_custom_call.1} parent=27 // pred_check
          %p157 = pneg %p55
        $region30: #{tpu_custom_call.1} parent=27 // pred_check_branch
          %159 = sbr.rel (%p157) target = $region32
        $region31: #{tpu_custom_call.1} parent=27 // pred_region
          %p160 = scmp.lt.s32.totalorder %s14, 1
          %s161 = scalar_select %p160, %s14, 1
          %s162 = smul.addr %s161, 8
          %s163 = scalar_lea.vmem %s1, %s162
        $region32: #{tpu_custom_call.1} parent=27 // pred_fallthru
          _
      $region28: #{tpu_custom_call.1} parent=5 // pred_fallthru
        _
      %p164 = scmp.le.s32.totalorder 1, %s14
      %p165 = scmp.lt.s32.totalorder %s14, 3
      %p166 = pnand %p164, %p165
      %p167 = pneg %p166
      // Predicated region
      $region33: #{tpu_custom_call.1} parent=5 // pred_check
        _
      $region34: #{tpu_custom_call.1} parent=5 // pred_check_branch
        %169 = sbr.rel (%p166) target = $region36
      $region35: #{tpu_custom_call.1} parent=5 // pred_region
        %s170 = ssub.s32 %s14, 1
        %p171 = pneg %p35
        %p172 = pneg %p32
        %p173 = scmp.lt.s32.totalorder %s19, 1
        %s174 = scalar_select %p173, %s19, 1
        %s175 = smul.addr %s174, 8
        %s176 = scalar_lea.vmem %s1, %s175
        %p177 = pneg %p61
        %p178 = pneg %p58
        %p179 = pneg %p82
        %p180 = pneg %p79
        %p181 = pneg %p103
        %p182 = pneg %p100
        %p183 = pneg %p129
        %p184 = pneg %p126
        %s185 = sand.u32 %s116, 1
        %s186 = scalar_lea.sflag [#allocation4], %s185
        %s187 = sand.u32 %s116, 1
        %s188 = smul.addr %s187, 8
        %s189 = scalar_lea.vmem [#allocation3], %s188
        %p190 = scmp.lt.s32.totalorder %s19, 1
        %s191 = scalar_select %p190, %s19, 1
        %s192 = smul.addr %s191, 8
        %s193 = scalar_lea.vmem %s1, %s192
        %v194 = vld [vmem:[%s193] sm:$0xff]
        %v195 = vld [vmem:[%s2] sm:$0xff]
        %v196 = vld [vmem:[%s2 + $0x8] sm:$0xff]
        %v197 = vld [vmem:[%s2 + $0x10] sm:$0xff]
        %v198 = vld [vmem:[%s2 + $0x18] sm:$0xff]
        %vm199 = vcmask 261120
        %v201 = vsel %vm199, %v194, 0
        %203 = vmatprep.subr.mxu0 0.0
        %204 = vmatpush1.msra.mxu0 %v195
        %205 = vmatprep.subr.mxu0 0.0
        %206 = vmatpush1.msra.mxu0 %v196
        %207 = vmatprep.subr.mxu0 0.0
        %208 = vmatpush1.msra.mxu0 %v197
        %209 = vmatprep.subr.mxu0 0.0
        %210 = vmatpush1.msra.mxu0 %v198
        %211 = vmatprep.subr.mxu0 0.0
        %212 = vmatpush1.msra.mxu0 0.0
        %213 = vmatprep.subr.mxu0 0.0
        %214 = vmatpush1.msra.mxu0 0.0
        %215 = vmatprep.subr.mxu0 0.0
        %216 = vmatpush1.msra.mxu0 0.0
        %217 = vmatprep.subr.mxu0 0.0
        %218 = vmatpush1.msra.mxu0 0.0
        %219 = vmatprep.subr.mxu0 0.0
        %220 = vmatpush1.msra.mxu0 0.0
        %221 = vmatprep.subr.mxu0 0.0
        %222 = vmatpush1.msra.mxu0 0.0
        %223 = vmatprep.subr.mxu0 0.0
        %224 = vmatpush1.msra.mxu0 0.0
        %225 = vmatprep.subr.mxu0 0.0
        %226 = vmatpush1.msra.mxu0 0.0
        %227 = vmatprep.subr.mxu0 0.0
        %228 = vmatpush1.msra.mxu0 0.0
        %229 = vmatprep.subr.mxu0 0.0
        %230 = vmatpush1.msra.mxu0 0.0
        %231 = vmatprep.subr.mxu0 0.0
        %232 = vmatpush1.msra.mxu0 0.0
        %233 = vmatprep.subr.mxu0 0.0
        %234 = vmatpush1.msra.mxu0 0.0
        %235 = vmatprep.subr.mxu0 0.0
        %236 = vmatpush1.msra.mxu0 0.0
        %237 = vmatprep.subr.mxu0 0.0
        %238 = vmatpush1.msra.mxu0 0.0
        %239 = vmatprep.subr.mxu0 0.0
        %240 = vmatpush1.msra.mxu0 0.0
        %241 = vmatprep.subr.mxu0 0.0
        %242 = vmatpush1.msra.mxu0 0.0
        %243 = vmatprep.subr.mxu0 0.0
        %244 = vmatpush1.msra.mxu0 0.0
        %245 = vmatprep.subr.mxu0 0.0
        %246 = vmatpush1.msra.mxu0 0.0
        %247 = vmatprep.subr.mxu0 0.0
        %248 = vmatpush1.msra.mxu0 0.0
        %249 = vmatprep.subr.mxu0 0.0
        %250 = vmatpush1.msra.mxu0 0.0
        %251 = vmatprep.subr.mxu0 0.0
        %252 = vmatpush1.msra.mxu0 0.0
        %253 = vmatprep.subr.mxu0 0.0
        %254 = vmatpush1.msra.mxu0 0.0
        %255 = vmatprep.subr.mxu0 0.0
        %256 = vmatpush1.msra.mxu0 0.0
        %257 = vmatprep.subr.mxu0 0.0
        %258 = vmatpush1.msra.mxu0 0.0
        %259 = vmatprep.subr.mxu0 0.0
        %260 = vmatpush1.msra.mxu0 0.0
        %261 = vmatprep.subr.mxu0 0.0
        %262 = vmatpush1.msra.mxu0 0.0
        %263 = vmatprep.subr.mxu0 0.0
        %264 = vmatpush1.msra.mxu0 0.0
        %265 = vmatprep.subr.mxu0 0.0
        %266 = vmatpush1.msra.mxu0 0.0
        %267 = vmatprep.mubr.f32.mxu0 0.0
        %268 = vmatmul.mubr.f32.gmra.mrb[0].mxu0 %v201
        %v269 = vpop.f32.mrb[0].mxu0
        %v270 = vadd.f32 0.0, %v269
        %v271 = vpop.f32.mrb[0].mxu0
        %272 = vdwg.mxu0
        %s273 = sld [smem:[#allocation2]]
        %v274 = vstv %s273
        %v275 = vmul.f32 %v274, %v270
        %v276 = vld [vmem:[%s3] sm:$0xff]
        %vm277 = vcmask 64512
        %v279 = vsel %vm277, %v275, 0
        %281 = vmatprep.subr.mxu0 0.0
        %282 = vmatpush1.msra.mxu0 %v276
        %283 = vmatprep.subr.mxu0 0.0
        %284 = vmatpush1.msra.mxu0 0.0
        %285 = vmatprep.subr.mxu0 0.0
        %286 = vmatpush1.msra.mxu0 0.0
        %287 = vmatprep.subr.mxu0 0.0
        %288 = vmatpush1.msra.mxu0 0.0
        %289 = vmatprep.subr.mxu0 0.0
        %290 = vmatpush1.msra.mxu0 0.0
        %291 = vmatprep.subr.mxu0 0.0
        %292 = vmatpush1.msra.mxu0 0.0
        %293 = vmatprep.subr.mxu0 0.0
        %294 = vmatpush1.msra.mxu0 0.0
        %295 = vmatprep.subr.mxu0 0.0
        %296 = vmatpush1.msra.mxu0 0.0
        %297 = vmatprep.subr.mxu0 0.0
        %298 = vmatpush1.msra.mxu0 0.0
        %299 = vmatprep.subr.mxu0 0.0
        %300 = vmatpush1.msra.mxu0 0.0
        %301 = vmatprep.subr.mxu0 0.0
        %302 = vmatpush1.msra.mxu0 0.0
        %303 = vmatprep.subr.mxu0 0.0
        %304 = vmatpush1.msra.mxu0 0.0
        %305 = vmatprep.subr.mxu0 0.0
        %306 = vmatpush1.msra.mxu0 0.0
        %307 = vmatprep.subr.mxu0 0.0
        %308 = vmatpush1.msra.mxu0 0.0
        %309 = vmatprep.subr.mxu0 0.0
        %310 = vmatpush1.msra.mxu0 0.0
        %311 = vmatprep.subr.mxu0 0.0
        %312 = vmatpush1.msra.mxu0 0.0
        %313 = vmatprep.subr.mxu0 0.0
        %314 = vmatpush1.msra.mxu0 0.0
        %315 = vmatprep.subr.mxu0 0.0
        %316 = vmatpush1.msra.mxu0 0.0
        %317 = vmatprep.subr.mxu0 0.0
        %318 = vmatpush1.msra.mxu0 0.0
        %319 = vmatprep.subr.mxu0 0.0
        %320 = vmatpush1.msra.mxu0 0.0
        %321 = vmatprep.subr.mxu0 0.0
        %322 = vmatpush1.msra.mxu0 0.0
        %323 = vmatprep.subr.mxu0 0.0
        %324 = vmatpush1.msra.mxu0 0.0
        %325 = vmatprep.subr.mxu0 0.0
        %326 = vmatpush1.msra.mxu0 0.0
        %327 = vmatprep.subr.mxu0 0.0
        %328 = vmatpush1.msra.mxu0 0.0
        %329 = vmatprep.subr.mxu0 0.0
        %330 = vmatpush1.msra.mxu0 0.0
        %331 = vmatprep.subr.mxu0 0.0
        %332 = vmatpush1.msra.mxu0 0.0
        %333 = vmatprep.subr.mxu0 0.0
        %334 = vmatpush1.msra.mxu0 0.0
        %335 = vmatprep.subr.mxu0 0.0
        %336 = vmatpush1.msra.mxu0 0.0
        %337 = vmatprep.subr.mxu0 0.0
        %338 = vmatpush1.msra.mxu0 0.0
        %339 = vmatprep.subr.mxu0 0.0
        %340 = vmatpush1.msra.mxu0 0.0
        %341 = vmatprep.subr.mxu0 0.0
        %342 = vmatpush1.msra.mxu0 0.0
        %343 = vmatprep.subr.mxu0 0.0
        %344 = vmatpush1.msra.mxu0 0.0
        %345 = vmatprep.mubr.f32.mxu0 0.0
        %346 = vmatmul.mubr.f32.gmra.mrb[0].mxu0 %v279
        %v347 = vpop.f32.mrb[0].mxu0
        %v348 = vadd.f32 0.0, %v347
        %v349 = vpop.f32.mrb[0].mxu0
        %350 = vdwg.mxu0
        %351 = vst [vmem:[%s189] sm:$0xff] %v348
        %s352 = sand.u32 %s116, 1
        %s353 = scalar_lea.sflag [#allocation4], %s352
        %s354 = sand.u32 %s116, 1
        %s355 = smul.addr %s354, 8
        %s356 = scalar_lea.vmem [#allocation3], %s355
        // Predicated region
        $region37: #{tpu_custom_call.1} parent=35 // pred_check
          %p357 = pneg %p126
        $region38: #{tpu_custom_call.1} parent=35 // pred_check_branch
          %359 = sbr.rel (%p357) target = $region40
        $region39: #{tpu_custom_call.1} parent=35 // pred_region
          %s361 = ssub.s32 128, 128
          %362 = vsyncadd %s353, %s361
          %s363 = smul.addr %s19, 128
          %s364 = scalar_lea.hbm %s4, %s363
          %s366 = sshll.u32 %s356, 4
          %s367 = int_to_ptr.vmem [resolvable:$true] %s366
          %369 = dma.vmem_to_hbm [thread:$0]  %s367, 128, %s364, %s353
        $region40: #{tpu_custom_call.1} parent=35 // pred_fallthru
          _
      $region36: #{tpu_custom_call.1} parent=5 // pred_fallthru
        _
      %p370 = scmp.le.s32.totalorder 2, %s14
      // Predicated region
      $region41: #{tpu_custom_call.1} parent=5 // pred_check
        %p371 = pneg %p370
      $region42: #{tpu_custom_call.1} parent=5 // pred_check_branch
        %373 = sbr.rel (%p371) target = $region44
      $region43: #{tpu_custom_call.1} parent=5 // pred_region
        %s374 = ssub.s32 %s14, 2
        // Predicated region
        $region45: #{tpu_custom_call.1} parent=43 // pred_check
          %p375 = pneg %p132
        $region46: #{tpu_custom_call.1} parent=43 // pred_check_branch
          %377 = sbr.rel (%p375) target = $region48
        $region47: #{tpu_custom_call.1} parent=43 // pred_region
          %s378 = sand.u32 %s117, 1
          %s379 = scalar_lea.sflag [#allocation4], %s378
          %s380 = sand.u32 %s117, 1
          %s381 = smul.addr %s380, 8
          %s382 = scalar_lea.vmem [#allocation3], %s381
          %383 = dma.done %s379, 128
        $region48: #{tpu_custom_call.1} parent=43 // pred_fallthru
          _
      $region44: #{tpu_custom_call.1} parent=5 // pred_fallthru
        _
    $region6: #{tpu_custom_call.1} parent=1 // loop_footer
      %s18 = sadd.s32 1, %s14
    $region7: #{tpu_custom_call.1} parent=1 // loop_footer_branch
      %13 = sbr.rel target = $region3
    $region8: #{tpu_custom_call.1} parent=1 // loop_exit
      _
    %384 = vsyncpa [#allocation4], 1
    %s385 = scalar_lea.sflag [#allocation4], 1
    %386 = vsyncpa %s385, 1

</llo_original>
